<compile_context>
chip_gen: v7x
topology: tpu7x:2x2x1
jax: 0.10.0
libtpu: 0.0.40
codegen_flags: <defaults>
</compile_context>

<pallas_src>
import math

import jax
import jax.numpy as jnp
from jax.experimental import pallas as pl
from jax.experimental.pallas import tpu as pltpu


def _copy_kernel(x_ref, o_ref):
    # Identity copy of one lane-dense tile: one vld + one vst per vreg.
    o_ref[...] = x_ref[...]


def _resolve_shape(numel, shape):
    """torch.Tensor.view-style target-shape resolution (supports one -1)."""
    shape = tuple(int(s) for s in shape)
    if shape.count(-1) > 1:
        raise ValueError("only one -1 is allowed in the target shape")
    if -1 in shape:
        known = 1
        for s in shape:
            if s != -1:
                known *= s
        if known == 0 or numel % known != 0:
            raise ValueError(f"cannot reshape {numel} elements into {shape}")
        shape = tuple(numel // known if s == -1 else s for s in shape)
    if math.prod(shape) != numel:
        raise ValueError(f"cannot reshape {numel} elements into {shape}")
    return shape


def _lane_dense_2d(numel):
    """Pick (rows, cols) with rows*cols == numel and cols a multiple of 128."""
    LANE = 128
    if numel % LANE != 0:
        return 1, numel  # fallback: single full-extent block (always legal)
    m = numel // LANE
    # Largest divisor of m up to 512 -> cols up to 64K elements (lane-dense,
    # but bounded so a single row block stays well inside VMEM).
    d = 1
    for cand in range(min(m, 512), 0, -1):
        if m % cand == 0:
            d = cand
            break
    cols = LANE * d
    return numel // cols, cols


def reshape(x, *shape):
    """Pallas-backed equivalent of `x.view(*shape)` (forward only)."""
    numel = x.size
    out_shape = _resolve_shape(numel, shape)

    rows, cols = _lane_dense_2d(numel)
    x2d = jnp.reshape(x, (rows, cols))  # metadata-only layout plumbing

    itemsize = jnp.dtype(x.dtype).itemsize
    block_budget_bytes = 2 * 1024 * 1024  # per block; ~4x resident when pipelined
    max_rows = max(1, block_budget_bytes // (cols * itemsize))

    if rows <= max_rows or rows % 8 != 0:
        # Whole (rows, cols) slab as one block (full extents are always legal).
        tile_rows = rows
    else:
        # Largest multiple-of-8 divisor of `rows` that fits the block budget.
        tile_rows = 8
        for cand in range(min(rows, (max_rows // 8) * 8), 7, -8):
            if rows % cand == 0:
                tile_rows = cand
                break

    grid = (rows // tile_rows,)

    y2d = pl.pallas_call(
        _copy_kernel,
        out_shape=jax.ShapeDtypeStruct((rows, cols), x.dtype),
        grid_spec=pltpu.PrefetchScalarGridSpec(
            num_scalar_prefetch=0,
            grid=grid,
            in_specs=[pl.BlockSpec((tile_rows, cols), lambda i: (i, 0))],
            out_specs=pl.BlockSpec((tile_rows, cols), lambda i: (i, 0)),
        ),
        compiler_params=pltpu.CompilerParams(
            dimension_semantics=("parallel",),
            vmem_limit_bytes=32 * 1024 * 1024,
        ),
    )(x2d)

    return jnp.reshape(y2d, out_shape)


if __name__ == "__main__":
    key = jax.random.PRNGKey(0)
    B, C, H, W = 2, 4, 16, 16
    x = jax.random.normal(key, (B, C, H, W), dtype=jnp.float32)

    # Reshape(B, -1): e.g. flatten before a classifier head -> (2, 1024).
    out = reshape(x, B, -1)
    out = jax.block_until_ready(out)
    assert out.shape == (B, C * H * W)
    assert jnp.array_equal(out, jnp.reshape(x, (B, -1))), "mismatch vs reference"

    # Another pattern: Reshape(-1, 256) -> (8, 256).
    out2 = jax.block_until_ready(reshape(x, -1, 256))
    assert out2.shape == (8, 256)
    assert jnp.array_equal(out2, jnp.reshape(x, (-1, 256))), "mismatch vs reference"

    print("KERNEL_OK")
</pallas_src>

<mosaic_0001>
module attributes {stable_mosaic.version = 11 : i64} {
  func.func @_copy_kernel(%arg0: i32, %arg1: memref<1x2048xf32, #tpu.memory_space<vmem>>, %arg2: memref<1x2048xf32, #tpu.memory_space<vmem>>) attributes {dimension_semantics = [#tpu.dimension_semantics<parallel>], iteration_bounds = array<i64: 1>, scalar_prefetch = 0 : i64, scratch_operands = 0 : i64, tpu.core_type = #tpu.core_type<tc>, window_params = [{transform_indices = @transform_0, window_bounds = array<i64: 1, 2048>}, {transform_indices = @transform_1, window_bounds = array<i64: 1, 2048>}]} {
    %c0 = arith.constant 0 : index
    %c0_0 = arith.constant 0 : index
    %0 = vector.load %arg1[%c0, %c0_0] : memref<1x2048xf32, #tpu.memory_space<vmem>>, vector<1x2048xf32>
    %c0_1 = arith.constant 0 : index
    %c0_2 = arith.constant 0 : index
    %1 = vector.load %arg2[%c0_1, %c0_2] : memref<1x2048xf32, #tpu.memory_space<vmem>>, vector<1x2048xf32>
    tpu.vector_store %arg2[%c0_1, %c0_2], %0 {strides = array<i32>} : memref<1x2048xf32, #tpu.memory_space<vmem>>, vector<1x2048xf32>,
    return
  }
  func.func @transform_0(%arg0: i32) -> (i32, i32) {
    %c0_i32 = arith.constant 0 : i32
    %c0_i32_0 = arith.constant 0 : i32
    return %arg0, %c0_i32 : i32, i32
  }
  func.func @transform_1(%arg0: i32) -> (i32, i32) {
    %c0_i32 = arith.constant 0 : i32
    %c0_i32_0 = arith.constant 0 : i32
    return %arg0, %c0_i32 : i32, i32
  }
}

</mosaic_0001>

<llo_original>
// kernel: tpu_custom_call.1
$region0: #{tpu_custom_call.1}
  #allocation0 [shape = 'u32[]', space=smem, size = 0x4, offset = 0x4, fixed_abs, tag = 'smem constant byte address 0x4 - core index']
  #allocation1 [shape = 'u32[144,128]{1,0:T(1,128)}', space=vmem, size = 0x12000, scoped, tag = 'internal scratch']
  %s0 = inlined_call_operand.hbm [shape: f32[1,2048], index: 0, kind: input, shape index: {}]
  %s1 = inlined_call_operand.hbm [shape: f32[1,2048], index: 1, kind: output, shape index: {}]
  %s2 = sld [smem:[#allocation0]]
  $region18: #{tpu_custom_call.1} parent=0
    _
  %s4 = ssub.s32 1, %s2
  %s5 = scalar_select 0, %s4, %s2
  $region1: #{tpu_custom_call.1} parent=0
    #allocation2 [shape = 'u8[8192]{0}', space=vmem, size = 0x2000, scoped, tag = 'input window, operand 0, single buffered']
    #allocation3 [shape = 's32[1]{0}', space=sflag, size = 0x4, scoped, tag = 'scoped memory for tpu_custom_call.1']
    #allocation4 [shape = 's32[1]{0}', space=sflag, size = 0x4, scoped, tag = 'scoped memory for tpu_custom_call.1']
    #allocation5 [shape = 'u8[8192]{0}', space=vmem, size = 0x2000, scoped, tag = 'output window, operand 0, single buffered']
    %6 = vsyncpa [#allocation3], 0
    %7 = vsyncpa [#allocation4], 0
    // Predicated region
    $region2: #{tpu_custom_call.1} parent=1 // pred_check
      _
    $region3: #{tpu_custom_call.1} parent=1 // pred_check_branch
      %9 = sbr.rel (0) target = $region5
    $region4: #{tpu_custom_call.1} parent=1 // pred_region
      %s11 = ssub.s32 256, 256
      %12 = vsyncadd [#allocation3], %s11
      %s14 = sshll.u32 [#allocation2], 4
      %s15 = int_to_ptr.vmem [resolvable:$true] %s14
      %17 = dma.hbm_to_vmem [thread:$0]  %s0, 256, %s15, [#allocation3]
    $region5: #{tpu_custom_call.1} parent=1 // pred_fallthru
      _
    // Predicated region
    $region6: #{tpu_custom_call.1} parent=1 // pred_check
      _
    $region7: #{tpu_custom_call.1} parent=1 // pred_check_branch
      %19 = sbr.rel (0) target = $region9
    $region8: #{tpu_custom_call.1} parent=1 // pred_region
      %20 = dma.done [#allocation3], 256
    $region9: #{tpu_custom_call.1} parent=1 // pred_fallthru
      _
    %v21 = vld [vmem:[#allocation2] sm:$0xff]
    %v22 = vld [vmem:[#allocation2 + $0x8] sm:$0xff]
    %23 = vst [vmem:[#allocation5] sm:$0xff] %v21
    %24 = vst [vmem:[#allocation5 + $0x8] sm:$0xff] %v22
    // Predicated region
    $region10: #{tpu_custom_call.1} parent=1 // pred_check
      _
    $region11: #{tpu_custom_call.1} parent=1 // pred_check_branch
      %26 = sbr.rel (0) target = $region13
    $region12: #{tpu_custom_call.1} parent=1 // pred_region
      %s28 = ssub.s32 256, 256
      %29 = vsyncadd [#allocation4], %s28
      %s31 = sshll.u32 [#allocation5], 4
      %s32 = int_to_ptr.vmem [resolvable:$true] %s31
      %34 = dma.vmem_to_hbm [thread:$0]  %s32, 256, %s1, [#allocation4]
    $region13: #{tpu_custom_call.1} parent=1 // pred_fallthru
      _
    // Predicated region
    $region14: #{tpu_custom_call.1} parent=1 // pred_check
      _
    $region15: #{tpu_custom_call.1} parent=1 // pred_check_branch
      %36 = sbr.rel (0) target = $region17
    $region16: #{tpu_custom_call.1} parent=1 // pred_region
      %37 = dma.done [#allocation4], 256
    $region17: #{tpu_custom_call.1} parent=1 // pred_fallthru
      _
    %38 = vsyncpa [#allocation3], 1
    %39 = vsyncpa [#allocation4], 1

</llo_original>
